<compile_context>
chip_gen: v6e
topology: v6e:2x2x1
jax: 0.10.0
libtpu: 0.0.40
codegen_flags: <defaults>
</compile_context>

<pallas_src>
import jax
import jax.numpy as jnp
from jax.experimental import pallas as pl
from jax.experimental.pallas import tpu as pltpu


def _round_up(x, m):
    return ((x + m - 1) // m) * m


def _cdiv(a, b):
    return -(-a // b)


def encoder_kernel(x_ref, w1_ref, b1_ref, wh_ref, bh_ref, out_ref):
    # hidden = relu(x @ W1 + b1)   (f32 accumulation on the MXU)
    x = x_ref[...]
    h = jnp.dot(x, w1_ref[...], preferred_element_type=jnp.float32)
    h = jnp.maximum(h + b1_ref[...].astype(jnp.float32), 0.0)
    # fused heads: [mean | log_var] = h @ [Wmu | Wvar] + [bmu | bvar]
    h = h.astype(wh_ref.dtype)  # bf16 path: native MXU input; f32 path: no-op
    out = jnp.dot(h, wh_ref[...], preferred_element_type=jnp.float32)
    out = out + bh_ref[...].astype(jnp.float32)
    out_ref[...] = out.astype(out_ref.dtype)


def prepare_encoder_params(w1, b1, wmu, bmu, wvar, bvar, *, compute_dtype=jnp.bfloat16):
    """Fuse the two heads and pad feature dims ONCE (batch-independent).

    w1:   [K, H]   b1:  [1, H]   (K = input_dim + n_classes, stored x @ W layout)
    wmu:  [H, L]   bmu: [1, L]
    wvar: [H, L]   bvar:[1, L]
    """
    K, H = w1.shape
    L = wmu.shape[1]
    Hp = _round_up(H, 128)
    Np = _round_up(2 * L, 128)
    dt = compute_dtype

    wh = jnp.concatenate([wmu, wvar], axis=1)                       # [H, 2L]
    bh = jnp.concatenate([bmu.reshape(1, L), bvar.reshape(1, L)], axis=1)

    # Zero-pad H and 2L to 128 lanes (exact: zero columns/rows contribute 0).
    # K (x's feature dim) is deliberately left unpadded.
    w1p = jnp.zeros((K, Hp), dt).at[:, :H].set(w1.astype(dt))
    b1p = jnp.zeros((1, Hp), dt).at[:, :H].set(b1.reshape(1, H).astype(dt))
    whp = jnp.zeros((Hp, Np), dt).at[:H, :2 * L].set(wh.astype(dt))
    bhp = jnp.zeros((1, Np), dt).at[:, :2 * L].set(bh.astype(dt))

    return {"w1": w1p, "b1": b1p, "wh": whp, "bh": bhp,
            "latent_dim": L, "dtype": dt}


def encoder_forward(x, prepared, *, block_m=2048):
    """Pallas VAE-encoder forward.

    x: [B, K] with K = input_dim + n_classes.
    prepared: output of prepare_encoder_params().
    returns (mean [B, L], log_var [B, L]) in the compute dtype.
    """
    w1p, b1p = prepared["w1"], prepared["b1"]
    whp, bhp = prepared["wh"], prepared["bh"]
    L = prepared["latent_dim"]
    dt = prepared["dtype"]

    B, K = x.shape
    assert K == w1p.shape[0], "x feature dim must match prepared W1"
    Hp = w1p.shape[1]
    Np = whp.shape[1]

    if x.dtype != dt:
        # For best perf, produce x upstream already in the compute dtype.
        x = x.astype(dt)

    itemsize = jnp.dtype(dt).itemsize
    row_align = 16 if itemsize < 4 else 8

    # ---- balanced batch tiles; >= 2 grid steps for moderately large B -------
    min_tiles = 2 if B >= 256 else 1
    n_tiles = max(_cdiv(B, block_m), min_tiles)
    tm = _round_up(_cdiv(B, n_tiles), row_align)

    if tm >= B:
        # Tiny batch: one tile; pad only if B isn't row-aligned (cheap copy).
        tm = _round_up(B, row_align)
        if tm > B:
            x = jnp.zeros((tm, K), dt).at[:B].set(x)
        b_in = tm
    else:
        # Large batch: no padded copy of x; the ragged last block is handled by
        # Pallas (bounded input read, masked output writeback). Rows are
        # independent, so garbage tail rows never contaminate valid outputs.
        b_in = B

    grid = (pl.cdiv(b_in, tm),)

    # ---- VMEM budget: only raise the scoped limit if a huge tile needs it ----
    est_vmem = 2 * itemsize * tm * (K + Np)                       # dbl-buffered x / out
    est_vmem += 2 * itemsize * (K * Hp + Hp + Hp * Np + Np)       # resident weights
    est_vmem += 4 * tm * (Hp + Np) + itemsize * tm * Hp           # in-kernel temporaries
    vmem_limit = None
    if est_vmem > (12 << 20):
        vmem_limit = min(int(est_vmem * 2), 48 << 20)

    vmem = pltpu.MemorySpace.VMEM
    out = pl.pallas_call(
        encoder_kernel,
        out_shape=jax.ShapeDtypeStruct((b_in, Np), dt),
        grid_spec=pltpu.PrefetchScalarGridSpec(
            num_scalar_prefetch=0,
            grid=grid,
            in_specs=[
                # x: tiled over the batch grid axis, feature dim unpadded.
                pl.BlockSpec((tm, K), lambda i: (i, 0), memory_space=vmem),
                # weights / biases: resident (same block every grid step).
                pl.BlockSpec((K, Hp), lambda i: (0, 0), memory_space=vmem),
                pl.BlockSpec((1, Hp), lambda i: (0, 0), memory_space=vmem),
                pl.BlockSpec((Hp, Np), lambda i: (0, 0), memory_space=vmem),
                pl.BlockSpec((1, Np), lambda i: (0, 0), memory_space=vmem),
            ],
            out_specs=pl.BlockSpec((tm, Np), lambda i: (i, 0), memory_space=vmem),
        ),
        compiler_params=pltpu.CompilerParams(
            dimension_semantics=("parallel",),
            vmem_limit_bytes=vmem_limit,
        ),
    )(x, w1p, b1p, whp, bhp)

    mean = out[:B, :L]
    log_var = out[:B, L:2 * L]
    return mean, log_var


def init_params(key, input_dim, hidden_dim, latent_dim, n_classes, dtype=jnp.float32):
    """Deterministic synthetic init matching nn.Linear shapes (stored transposed)."""
    d_in = input_dim + n_classes
    keys = jax.random.split(key, 6)

    def lin(kw, kb, fan_in, fan_out):
        bound = 1.0 / jnp.sqrt(fan_in)
        w = jax.random.uniform(kw, (fan_in, fan_out), dtype, -bound, bound)
        b = jax.random.uniform(kb, (1, fan_out), dtype, -bound, bound)
        return w, b

    w1, b1 = lin(keys[0], keys[1], d_in, hidden_dim)
    wmu, bmu = lin(keys[2], keys[3], hidden_dim, latent_dim)
    wvar, bvar = lin(keys[4], keys[5], hidden_dim, latent_dim)
    return w1, b1, wmu, bmu, wvar, bvar


def _reference(x, params, quant_dtype=jnp.float32):
    """f32 reference; optionally quantizes inputs/weights to quant_dtype first."""
    w1, b1, wmu, bmu, wvar, bvar = [
        p.astype(quant_dtype).astype(jnp.float32) for p in params
    ]
    xq = x.astype(quant_dtype).astype(jnp.float32)
    h = jnp.maximum(xq @ w1 + b1, 0.0)
    return h @ wmu + bmu, h @ wvar + bvar


if __name__ == "__main__":
    # Small, module-consistent shapes.
    batch = 8
    input_dim = 32
    n_classes = 8
    hidden_dim = 64
    latent_dim = 16

    key = jax.random.PRNGKey(0)
    kx, kp, kx2 = jax.random.split(key, 3)

    x_small = jax.random.normal(kx, (batch, input_dim + n_classes), jnp.float32)
    x_large = jax.random.normal(kx2, (300, input_dim + n_classes), jnp.float32)
    params = init_params(kp, input_dim, hidden_dim, latent_dim, n_classes)

    # ---- f32 path: exact correctness (single tile + ragged 2-step grid) ------
    prep_f32 = prepare_encoder_params(*params, compute_dtype=jnp.float32)
    for x in (x_small, x_large):
        mean, log_var = encoder_forward(x, prep_f32)
        jax.block_until_ready((mean, log_var))
        m_ref, v_ref = _reference(x, params, jnp.float32)
        assert mean.shape == (x.shape[0], latent_dim)
        assert log_var.shape == (x.shape[0], latent_dim)
        assert jnp.allclose(mean, m_ref, atol=1e-5, rtol=1e-5)
        assert jnp.allclose(log_var, v_ref, atol=1e-5, rtol=1e-5)

    # ---- bf16 I/O path (perf default): compare vs bf16-quantized reference ---
    prep_bf16 = prepare_encoder_params(*params)  # compute_dtype=bf16 default
    for x in (x_small, x_large):
        mean, log_var = encoder_forward(x, prep_bf16)
        jax.block_until_ready((mean, log_var))
        m_ref, v_ref = _reference(x, params, jnp.bfloat16)
        assert mean.shape == (x.shape[0], latent_dim)
        assert log_var.shape == (x.shape[0], latent_dim)
        assert jnp.allclose(mean.astype(jnp.float32), m_ref, atol=3e-2, rtol=3e-2)
        assert jnp.allclose(log_var.astype(jnp.float32), v_ref, atol=3e-2, rtol=3e-2)

    print("KERNEL_OK")
</pallas_src>

<mosaic_0001>
module attributes {stable_mosaic.version = 11 : i64} {
  func.func @encoder_kernel(%arg0: i32, %arg1: memref<8x40xf32, #tpu.memory_space<vmem>>, %arg2: memref<40x128xf32, #tpu.memory_space<vmem>>, %arg3: memref<1x128xf32, #tpu.memory_space<vmem>>, %arg4: memref<128x128xf32, #tpu.memory_space<vmem>>, %arg5: memref<1x128xf32, #tpu.memory_space<vmem>>, %arg6: memref<8x128xf32, #tpu.memory_space<vmem>>) attributes {dimension_semantics = [#tpu.dimension_semantics<parallel>], iteration_bounds = array<i64: 1>, scalar_prefetch = 0 : i64, scratch_operands = 0 : i64, tpu.core_type = #tpu.core_type<tc>, window_params = [{transform_indices = @transform_0, window_bounds = array<i64: 8, 40>}, {pipeline_mode = #tpu.pipeline_mode<synchronous>, transform_indices = @transform_1, window_bounds = array<i64: 40, 128>}, {pipeline_mode = #tpu.pipeline_mode<synchronous>, transform_indices = @transform_2, window_bounds = array<i64: 1, 128>}, {pipeline_mode = #tpu.pipeline_mode<synchronous>, transform_indices = @transform_3, window_bounds = array<i64: 128, 128>}, {pipeline_mode = #tpu.pipeline_mode<synchronous>, transform_indices = @transform_4, window_bounds = array<i64: 1, 128>}, {transform_indices = @transform_5, window_bounds = array<i64: 8, 128>}]} {
    %c0 = arith.constant 0 : index
    %c0_0 = arith.constant 0 : index
    %0 = vector.load %arg1[%c0, %c0_0] : memref<8x40xf32, #tpu.memory_space<vmem>>, vector<8x40xf32>
    %c0_1 = arith.constant 0 : index
    %c0_2 = arith.constant 0 : index
    %1 = vector.load %arg2[%c0_1, %c0_2] : memref<40x128xf32, #tpu.memory_space<vmem>>, vector<40x128xf32>
    %cst = arith.constant dense<0.000000e+00> : vector<8x128xf32>
    %2 = tpu.matmul %0, %1, %cst {dimension_numbers = #tpu.dot_dimension_numbers<[1], [0], [0], [1], [0, 0, 1, 1], [], []>} : vector<8x40xf32>, vector<40x128xf32>, vector<8x128xf32> -> vector<8x128xf32>
    %c0_3 = arith.constant 0 : index
    %c0_4 = arith.constant 0 : index
    %3 = vector.load %arg3[%c0_3, %c0_4] : memref<1x128xf32, #tpu.memory_space<vmem>>, vector<1x128xf32>
    %4 = vector.broadcast %3 : vector<1x128xf32> to vector<8x128xf32>
    %5 = arith.addf %2, %4 : vector<8x128xf32>
    %cst_5 = arith.constant 0.000000e+00 : f32
    %6 = vector.broadcast %cst_5 : f32 to vector<8x128xf32>
    %7 = arith.maximumf %5, %6 : vector<8x128xf32>
    %c0_6 = arith.constant 0 : index
    %c0_7 = arith.constant 0 : index
    %8 = vector.load %arg4[%c0_6, %c0_7] : memref<128x128xf32, #tpu.memory_space<vmem>>, vector<128x128xf32>
    %cst_8 = arith.constant dense<0.000000e+00> : vector<8x128xf32>
    %9 = tpu.matmul %7, %8, %cst_8 {dimension_numbers = #tpu.dot_dimension_numbers<[1], [0], [0], [1], [0, 0, 1, 1], [], []>} : vector<8x128xf32>, vector<128x128xf32>, vector<8x128xf32> -> vector<8x128xf32>
    %c0_9 = arith.constant 0 : index
    %c0_10 = arith.constant 0 : index
    %10 = vector.load %arg5[%c0_9, %c0_10] : memref<1x128xf32, #tpu.memory_space<vmem>>, vector<1x128xf32>
    %11 = vector.broadcast %10 : vector<1x128xf32> to vector<8x128xf32>
    %12 = arith.addf %9, %11 : vector<8x128xf32>
    %c0_11 = arith.constant 0 : index
    %c0_12 = arith.constant 0 : index
    %13 = vector.load %arg6[%c0_11, %c0_12] : memref<8x128xf32, #tpu.memory_space<vmem>>, vector<8x128xf32>
    tpu.vector_store %arg6[%c0_11, %c0_12], %12 {strides = array<i32>} : memref<8x128xf32, #tpu.memory_space<vmem>>, vector<8x128xf32>,
    return
  }
  func.func @transform_0(%arg0: i32) -> (i32, i32) {
    %c0_i32 = arith.constant 0 : i32
    %c0_i32_0 = arith.constant 0 : i32
    return %arg0, %c0_i32 : i32, i32
  }
  func.func @transform_1(%arg0: i32) -> (i32, i32) {
    %c0_i32 = arith.constant 0 : i32
    %c0_i32_0 = arith.constant 0 : i32
    %c0_i32_1 = arith.constant 0 : i32
    return %c0_i32, %c0_i32_0 : i32, i32
  }
  func.func @transform_2(%arg0: i32) -> (i32, i32) {
    %c0_i32 = arith.constant 0 : i32
    %c0_i32_0 = arith.constant 0 : i32
    %c0_i32_1 = arith.constant 0 : i32
    return %c0_i32, %c0_i32_0 : i32, i32
  }
  func.func @transform_3(%arg0: i32) -> (i32, i32) {
    %c0_i32 = arith.constant 0 : i32
    %c0_i32_0 = arith.constant 0 : i32
    %c0_i32_1 = arith.constant 0 : i32
    return %c0_i32, %c0_i32_0 : i32, i32
  }
  func.func @transform_4(%arg0: i32) -> (i32, i32) {
    %c0_i32 = arith.constant 0 : i32
    %c0_i32_0 = arith.constant 0 : i32
    %c0_i32_1 = arith.constant 0 : i32
    return %c0_i32, %c0_i32_0 : i32, i32
  }
  func.func @transform_5(%arg0: i32) -> (i32, i32) {
    %c0_i32 = arith.constant 0 : i32
    %c0_i32_0 = arith.constant 0 : i32
    return %arg0, %c0_i32 : i32, i32
  }
}

</mosaic_0001>

<llo_original>
// kernel: tpu_custom_call.1
$region0: #{tpu_custom_call.1}
  #allocation0 [shape = 'u32[]', space=smem, size = 0x4, offset = 0x4, fixed_abs, tag = 'smem constant byte address 0x4 - core index']
  #allocation1 [shape = 'u32[144,128]{1,0:T(1,128)}', space=vmem, size = 0x12000, scoped, tag = 'internal scratch']
  %s0 = inlined_call_operand.hbm [shape: f32[8,40], index: 0, kind: input, shape index: {}]
  %s1 = inlined_call_operand.hbm [shape: f32[40,128], index: 1, kind: input, shape index: {}]
  %s2 = inlined_call_operand.vmem [shape: f32[1,128], index: 2, kind: input, shape index: {}]
  %s3 = inlined_call_operand.hbm [shape: f32[128,128], index: 3, kind: input, shape index: {}]
  %s4 = inlined_call_operand.vmem [shape: f32[1,128], index: 4, kind: input, shape index: {}]
  %s5 = inlined_call_operand.hbm [shape: f32[8,128], index: 5, kind: output, shape index: {}]
  %s6 = sld [smem:[#allocation0]]
  $region42: #{tpu_custom_call.1} parent=0
    _
  %s8 = ssub.s32 1, %s6
  %s9 = scalar_select 0, %s8, %s6
  $region1: #{tpu_custom_call.1} parent=0
    #allocation2 [shape = 'u8[4096]{0}', space=vmem, size = 0x1000, scoped, tag = 'input window, operand 0, single buffered']
    #allocation3 [shape = 's32[1]{0}', space=sflag, size = 0x4, scoped, tag = 'scoped memory for tpu_custom_call.1']
    #allocation4 [shape = 's32[1]{0}', space=sflag, size = 0x4, scoped, tag = 'scoped memory for tpu_custom_call.1']
    #allocation5 [shape = 'u8[20480]{0}', space=vmem, size = 0x5000, scoped, tag = 'input window, operand 1, single buffered']
    #allocation6 [shape = 's32[1]{0}', space=sflag, size = 0x4, scoped, tag = 'scoped memory for tpu_custom_call.1']
    #allocation7 [shape = 'u8[65536]{0}', space=vmem, size = 0x10000, scoped, tag = 'input window, operand 3, single buffered']
    #allocation8 [shape = 'u8[4096]{0}', space=vmem, size = 0x1000, scoped, tag = 'output window, operand 0, single buffered']
    %10 = vsyncpa [#allocation3], 0
    %11 = vsyncpa [#allocation6], 0
    %12 = vsyncpa [#allocation4], 0
    // Predicated region
    $region2: #{tpu_custom_call.1} parent=1 // pred_check
      _
    $region3: #{tpu_custom_call.1} parent=1 // pred_check_branch
      %14 = sbr.rel (0) target = $region5
    $region4: #{tpu_custom_call.1} parent=1 // pred_region
      %s16 = ssub.s32 128, 128
      %17 = vsyncadd [#allocation3], %s16
      %s19 = sshll.u32 [#allocation2], 4
      %s20 = int_to_ptr.vmem [resolvable:$true] %s19
      %22 = dma.hbm_to_vmem [thread:$0]  %s0, 128, %s20, [#allocation3]
    $region5: #{tpu_custom_call.1} parent=1 // pred_fallthru
      _
    // Predicated region
    $region6: #{tpu_custom_call.1} parent=1 // pred_check
      _
    $region7: #{tpu_custom_call.1} parent=1 // pred_check_branch
      %24 = sbr.rel (0) target = $region9
    $region8: #{tpu_custom_call.1} parent=1 // pred_region
      %s26 = ssub.s32 640, 640
      %27 = vsyncadd [#allocation6], %s26
      %s28 = sshll.u32 [#allocation5], 4
      %s29 = int_to_ptr.vmem [resolvable:$true] %s28
      %34 = dma.hbm_to_vmem [thread:$0]  %s1, 640, %s29, [#allocation6], 128, 128, 8
    $region9: #{tpu_custom_call.1} parent=1 // pred_fallthru
      _
    // Predicated region
    $region10: #{tpu_custom_call.1} parent=1 // pred_check
      _
    $region11: #{tpu_custom_call.1} parent=1 // pred_check_branch
      %36 = sbr.rel (0) target = $region13
    $region12: #{tpu_custom_call.1} parent=1 // pred_region
      _
    $region13: #{tpu_custom_call.1} parent=1 // pred_fallthru
      _
    // Predicated region
    $region14: #{tpu_custom_call.1} parent=1 // pred_check
      _
    $region15: #{tpu_custom_call.1} parent=1 // pred_check_branch
      %38 = sbr.rel (0) target = $region17
    $region16: #{tpu_custom_call.1} parent=1 // pred_region
      %s40 = ssub.s32 2048, 2048
      %41 = vsyncadd [#allocation6], %s40
      %s42 = sshll.u32 [#allocation7], 4
      %s43 = int_to_ptr.vmem [resolvable:$true] %s42
      %48 = dma.hbm_to_vmem [thread:$0]  %s3, 2048, %s43, [#allocation6], 128, 128, 8
    $region17: #{tpu_custom_call.1} parent=1 // pred_fallthru
      _
    // Predicated region
    $region18: #{tpu_custom_call.1} parent=1 // pred_check
      _
    $region19: #{tpu_custom_call.1} parent=1 // pred_check_branch
      %50 = sbr.rel (0) target = $region21
    $region20: #{tpu_custom_call.1} parent=1 // pred_region
      _
    $region21: #{tpu_custom_call.1} parent=1 // pred_fallthru
      _
    // Predicated region
    $region22: #{tpu_custom_call.1} parent=1 // pred_check
      _
    $region23: #{tpu_custom_call.1} parent=1 // pred_check_branch
      %52 = sbr.rel (0) target = $region25
    $region24: #{tpu_custom_call.1} parent=1 // pred_region
      %53 = dma.done [#allocation3], 128
    $region25: #{tpu_custom_call.1} parent=1 // pred_fallthru
      _
    // Predicated region
    $region26: #{tpu_custom_call.1} parent=1 // pred_check
      _
    $region27: #{tpu_custom_call.1} parent=1 // pred_check_branch
      %55 = sbr.rel (0) target = $region29
    $region28: #{tpu_custom_call.1} parent=1 // pred_region
      %56 = dma.done [#allocation6], 640
    $region29: #{tpu_custom_call.1} parent=1 // pred_fallthru
      _
    // Predicated region
    $region30: #{tpu_custom_call.1} parent=1 // pred_check
      _
    $region31: #{tpu_custom_call.1} parent=1 // pred_check_branch
      %58 = sbr.rel (0) target = $region33
    $region32: #{tpu_custom_call.1} parent=1 // pred_region
      %59 = dma.done [#allocation6], 2048
    $region33: #{tpu_custom_call.1} parent=1 // pred_fallthru
      _
    %v60 = vld [vmem:[#allocation2] sm:$0xff]
    %v61 = vld [vmem:[#allocation5] sm:$0xff]
    %v62 = vld [vmem:[#allocation5 + $0x8] sm:$0xff]
    %v63 = vld [vmem:[#allocation5 + $0x10] sm:$0xff]
    %v64 = vld [vmem:[#allocation5 + $0x18] sm:$0xff]
    %v65 = vld [vmem:[#allocation5 + $0x20] sm:$0xff]
    %v66 = vld [vmem:[%s2] sm:$0x1]
    %v68 = vlaneseq
    %v69 = vshrl.u32 %v68, 7
    %v70 = vsub.s32 0, %v69
    %v71 = vrot.slane %v66, %v70
    %vm73 = vcmask 326656
    %v75 = vsel %vm73, %v60, 0
    %77 = vmatprep.subr.mxu0 0.0
    %78 = vmatpush1.msra.mxu0 0.0
    %79 = vmatprep.subr.mxu0 0.0
    %80 = vmatpush1.msra.mxu0 0.0
    %81 = vmatprep.subr.mxu0 0.0
    %82 = vmatpush1.msra.mxu0 0.0
    %83 = vmatprep.subr.mxu0 0.0
    %84 = vmatpush1.msra.mxu0 0.0
    %85 = vmatprep.subr.mxu0 0.0
    %86 = vmatpush1.msra.mxu0 0.0
    %87 = vmatprep.subr.mxu0 0.0
    %88 = vmatpush1.msra.mxu0 0.0
    %89 = vmatprep.subr.mxu0 0.0
    %90 = vmatpush1.msra.mxu0 0.0
    %91 = vmatprep.subr.mxu0 0.0
    %92 = vmatpush1.msra.mxu0 0.0
    %93 = vmatprep.subr.mxu0 0.0
    %94 = vmatpush1.msra.mxu0 0.0
    %95 = vmatprep.subr.mxu0 0.0
    %96 = vmatpush1.msra.mxu0 0.0
    %97 = vmatprep.subr.mxu0 0.0
    %98 = vmatpush1.msra.mxu0 0.0
    %99 = vmatprep.subr.mxu0 0.0
    %100 = vmatpush1.msra.mxu0 %v65
    %101 = vmatprep.subr.mxu0 0.0
    %102 = vmatpush1.msra.mxu0 %v64
    %103 = vmatprep.subr.mxu0 0.0
    %104 = vmatpush1.msra.mxu0 %v63
    %105 = vmatprep.subr.mxu0 0.0
    %106 = vmatpush1.msra.mxu0 %v62
    %107 = vmatprep.subr.mxu0 0.0
    %108 = vmatpush1.msra.mxu0 %v61
    %109 = vmatprep.subr.mxu0 0.0
    %110 = vmatpush2.msra.mxu0 0.0
    %111 = vmatprep.subr.mxu0 0.0
    %112 = vmatpush2.msra.mxu0 0.0
    %113 = vmatprep.subr.mxu0 0.0
    %114 = vmatpush2.msra.mxu0 0.0
    %115 = vmatprep.subr.mxu0 0.0
    %116 = vmatpush2.msra.mxu0 0.0
    %117 = vmatprep.subr.mxu0 0.0
    %118 = vmatpush2.msra.mxu0 0.0
    %119 = vmatprep.subr.mxu0 0.0
    %120 = vmatpush2.msra.mxu0 0.0
    %121 = vmatprep.subr.mxu0 0.0
    %122 = vmatpush2.msra.mxu0 0.0
    %123 = vmatprep.subr.mxu0 0.0
    %124 = vmatpush2.msra.mxu0 0.0
    %125 = vmatprep.subr.mxu0 0.0
    %126 = vmatpush2.msra.mxu0 0.0
    %127 = vmatprep.subr.mxu0 0.0
    %128 = vmatpush2.msra.mxu0 0.0
    %129 = vmatprep.subr.mxu0 0.0
    %130 = vmatpush2.msra.mxu0 0.0
    %131 = vmatprep.subr.mxu0 0.0
    %132 = vmatpush2.msra.mxu0 0.0
    %133 = vmatprep.subr.mxu0 0.0
    %134 = vmatpush2.msra.mxu0 0.0
    %135 = vmatprep.subr.mxu0 0.0
    %136 = vmatpush2.msra.mxu0 0.0
    %137 = vmatprep.subr.mxu0 0.0
    %138 = vmatpush2.msra.mxu0 0.0
    %139 = vmatprep.subr.mxu0 0.0
    %140 = vmatpush2.msra.mxu0 0.0
    %141 = vmatprep.mubr.f32.mxu0 0.0
    %142 = vmatmul.mubr.f32.gmra.mxu0 %v75
    %v143 = vpop.f32.mrf.mxu0
    %v144 = vadd.f32 %v71, %v143
    %v145 = vpop.f32.mrf.mxu0
    %146 = vdwg.mxu0
    %v147 = vmax.f32 %v144, 0.0
    %v148 = vld [vmem:[#allocation7] sm:$0xff]
    %v149 = vld [vmem:[#allocation7 + $0x8] sm:$0xff]
    %v150 = vld [vmem:[#allocation7 + $0x10] sm:$0xff]
    %v151 = vld [vmem:[#allocation7 + $0x18] sm:$0xff]
    %v152 = vld [vmem:[#allocation7 + $0x20] sm:$0xff]
    %v153 = vld [vmem:[#allocation7 + $0x28] sm:$0xff]
    %v154 = vld [vmem:[#allocation7 + $0x30] sm:$0xff]
    %v155 = vld [vmem:[#allocation7 + $0x38] sm:$0xff]
    %v156 = vld [vmem:[#allocation7 + $0x40] sm:$0xff]
    %v157 = vld [vmem:[#allocation7 + $0x48] sm:$0xff]
    %v158 = vld [vmem:[#allocation7 + $0x50] sm:$0xff]
    %v159 = vld [vmem:[#allocation7 + $0x58] sm:$0xff]
    %v160 = vld [vmem:[#allocation7 + $0x60] sm:$0xff]
    %v161 = vld [vmem:[#allocation7 + $0x68] sm:$0xff]
    %v162 = vld [vmem:[#allocation7 + $0x70] sm:$0xff]
    %v163 = vld [vmem:[#allocation7 + $0x78] sm:$0xff]
    %v164 = vld [vmem:[%s4] sm:$0x1]
    %v166 = vlaneseq
    %v167 = vshrl.u32 %v166, 7
    %v168 = vsub.s32 0, %v167
    %v169 = vrot.slane %v164, %v168
    %171 = vmatprep.subr.mxu0 0.0
    %172 = vmatpush1.msra.mxu0 %v163
    %173 = vmatprep.subr.mxu0 0.0
    %174 = vmatpush1.msra.mxu0 %v162
    %175 = vmatprep.subr.mxu0 0.0
    %176 = vmatpush1.msra.mxu0 %v161
    %177 = vmatprep.subr.mxu0 0.0
    %178 = vmatpush1.msra.mxu0 %v160
    %179 = vmatprep.subr.mxu0 0.0
    %180 = vmatpush1.msra.mxu0 %v159
    %181 = vmatprep.subr.mxu0 0.0
    %182 = vmatpush1.msra.mxu0 %v158
    %183 = vmatprep.subr.mxu0 0.0
    %184 = vmatpush1.msra.mxu0 %v157
    %185 = vmatprep.subr.mxu0 0.0
    %186 = vmatpush1.msra.mxu0 %v156
    %187 = vmatprep.subr.mxu0 0.0
    %188 = vmatpush1.msra.mxu0 %v155
    %189 = vmatprep.subr.mxu0 0.0
    %190 = vmatpush1.msra.mxu0 %v154
    %191 = vmatprep.subr.mxu0 0.0
    %192 = vmatpush1.msra.mxu0 %v153
    %193 = vmatprep.subr.mxu0 0.0
    %194 = vmatpush1.msra.mxu0 %v152
    %195 = vmatprep.subr.mxu0 0.0
    %196 = vmatpush1.msra.mxu0 %v151
    %197 = vmatprep.subr.mxu0 0.0
    %198 = vmatpush1.msra.mxu0 %v150
    %199 = vmatprep.subr.mxu0 0.0
    %200 = vmatpush1.msra.mxu0 %v149
    %201 = vmatprep.subr.mxu0 0.0
    %202 = vmatpush1.msra.mxu0 %v148
    %203 = vmatprep.subr.mxu0 0.0
    %204 = vmatpush2.msra.mxu0 0.0
    %205 = vmatprep.subr.mxu0 0.0
    %206 = vmatpush2.msra.mxu0 0.0
    %207 = vmatprep.subr.mxu0 0.0
    %208 = vmatpush2.msra.mxu0 0.0
    %209 = vmatprep.subr.mxu0 0.0
    %210 = vmatpush2.msra.mxu0 0.0
    %211 = vmatprep.subr.mxu0 0.0
    %212 = vmatpush2.msra.mxu0 0.0
    %213 = vmatprep.subr.mxu0 0.0
    %214 = vmatpush2.msra.mxu0 0.0
    %215 = vmatprep.subr.mxu0 0.0
    %216 = vmatpush2.msra.mxu0 0.0
    %217 = vmatprep.subr.mxu0 0.0
    %218 = vmatpush2.msra.mxu0 0.0
    %219 = vmatprep.subr.mxu0 0.0
    %220 = vmatpush2.msra.mxu0 0.0
    %221 = vmatprep.subr.mxu0 0.0
    %222 = vmatpush2.msra.mxu0 0.0
    %223 = vmatprep.subr.mxu0 0.0
    %224 = vmatpush2.msra.mxu0 0.0
    %225 = vmatprep.subr.mxu0 0.0
    %226 = vmatpush2.msra.mxu0 0.0
    %227 = vmatprep.subr.mxu0 0.0
    %228 = vmatpush2.msra.mxu0 0.0
    %229 = vmatprep.subr.mxu0 0.0
    %230 = vmatpush2.msra.mxu0 0.0
    %231 = vmatprep.subr.mxu0 0.0
    %232 = vmatpush2.msra.mxu0 0.0
    %233 = vmatprep.subr.mxu0 0.0
    %234 = vmatpush2.msra.mxu0 0.0
    %235 = vmatprep.mubr.f32.mxu0 0.0
    %236 = vmatmul.mubr.f32.gmra.mxu0 %v147
    %v237 = vpop.f32.mrf.mxu0
    %v238 = vadd.f32 %v169, %v237
    %v239 = vpop.f32.mrf.mxu0
    %240 = vdwg.mxu0
    %241 = vst [vmem:[#allocation8] sm:$0xff] %v238
    // Predicated region
    $region34: #{tpu_custom_call.1} parent=1 // pred_check
      _
    $region35: #{tpu_custom_call.1} parent=1 // pred_check_branch
      %243 = sbr.rel (0) target = $region37
    $region36: #{tpu_custom_call.1} parent=1 // pred_region
      %s245 = ssub.s32 128, 128
      %246 = vsyncadd [#allocation4], %s245
      %s248 = sshll.u32 [#allocation8], 4
      %s249 = int_to_ptr.vmem [resolvable:$true] %s248
      %251 = dma.vmem_to_hbm [thread:$0]  %s249, 128, %s5, [#allocation4]
    $region37: #{tpu_custom_call.1} parent=1 // pred_fallthru
      _
    // Predicated region
    $region38: #{tpu_custom_call.1} parent=1 // pred_check
      _
    $region39: #{tpu_custom_call.1} parent=1 // pred_check_branch
      %253 = sbr.rel (0) target = $region41
    $region40: #{tpu_custom_call.1} parent=1 // pred_region
      %254 = dma.done [#allocation4], 128
    $region41: #{tpu_custom_call.1} parent=1 // pred_fallthru
      _
    %255 = vsyncpa [#allocation3], 1
    %256 = vsyncpa [#allocation6], 1
    %257 = vsyncpa [#allocation4], 1

</llo_original>
